<compile_context>
chip_gen: v7x
topology: tpu7x:2x2x1
jax: 0.10.0
libtpu: 0.0.40
codegen_flags: <defaults>
</compile_context>

<pallas_src>
import functools

import jax
import jax.numpy as jnp
from jax.experimental import pallas as pl
from jax.experimental.pallas import tpu as pltpu


# ----------------------------------------------------------------------------
# Fused conv (+ InstanceNorm / ReLU / residual-add / tanh) kernel
# ----------------------------------------------------------------------------
def _conv_kernel(w_ref, col_ref, scale_ref, shift_ref, *rest,
                 norm, relu, tanh, add_res):
    # w_ref:    (O, K)        full weight matrix
    # col_ref:  (1, K, HW)    im2col slab for one image
    # scale/shift: (O, 1)     instance-norm affine params (unused if not norm)
    # rest:     ([res_ref (1, O, HW)], out_ref (1, O, HW))
    out_ref = rest[-1]
    y = jnp.dot(w_ref[...], col_ref[0],
                preferred_element_type=jnp.float32)            # (O, HW)
    if norm:
        # Per-(image, channel) statistics over the full HW lane axis
        # (training-mode InstanceNorm2d, biased variance, eps=1e-5).
        mean = jnp.mean(y, axis=-1, keepdims=True)
        cen = y - mean
        var = jnp.mean(cen * cen, axis=-1, keepdims=True)
        y = cen * jax.lax.rsqrt(var + 1e-5)
        y = y * scale_ref[...] + shift_ref[...]
    if relu:
        y = jnp.maximum(y, 0.0)
    if tanh:
        y = jnp.tanh(y)
    if add_res:
        y = y + rest[0][0]
    out_ref[0] = y.astype(out_ref.dtype)


def _im2col(x, kh, kw, stride, pad):
    # x: (N, C, H, W) -> (N, C*kh*kw, Ho*Wo); K ordered (c, kh, kw), no
    # strided transpose (stack lands directly in the layout the kernel wants).
    # TODO(synk): im2col is still materialized host-side (one HBM pass of the
    # kh*kw-blown-up tensor); a fully in-kernel implicit-GEMM gather via
    # index_map is left for a follow-up.
    xp = jnp.pad(x, ((0, 0), (0, 0), (pad, pad), (pad, pad)))
    N, C, Hp, Wp = xp.shape
    Ho = (Hp - kh) // stride + 1
    Wo = (Wp - kw) // stride + 1
    cols = [xp[:, :, i:i + stride * Ho:stride, j:j + stride * Wo:stride]
            for i in range(kh) for j in range(kw)]
    col = jnp.stack(cols, axis=2)                  # (N, C, kh*kw, Ho, Wo)
    return col.reshape(N, C * kh * kw, Ho * Wo), Ho, Wo


def conv2d_fused(x, w, stride, pad, *, norm=False, relu=False, tanh=False,
                 scale=None, shift=None, residual=None):
    """Bias-free conv2d with fused IN/ReLU/residual/tanh epilogue.

    x: (N, C, H, W); w: (O, C, kh, kw) (PyTorch layout)."""
    N = x.shape[0]
    O, _, kh, kw = w.shape
    col, Ho, Wo = _im2col(x, kh, kw, stride, pad)   # (N, K, HW)
    K = col.shape[1]
    HW = Ho * Wo
    wm = w.reshape(O, K)

    if scale is None:
        scale = jnp.ones((O,), jnp.float32)
    if shift is None:
        shift = jnp.zeros((O,), jnp.float32)
    scale2 = scale.reshape(O, 1).astype(jnp.float32)
    shift2 = shift.reshape(O, 1).astype(jnp.float32)

    add_res = residual is not None
    inputs = [wm, col, scale2, shift2]
    in_specs = [
        pl.BlockSpec((O, K), lambda n: (0, 0)),
        pl.BlockSpec((1, K, HW), lambda n: (n, 0, 0)),
        pl.BlockSpec((O, 1), lambda n: (0, 0)),
        pl.BlockSpec((O, 1), lambda n: (0, 0)),
    ]
    if add_res:
        inputs.append(residual.reshape(N, O, HW))
        in_specs.append(pl.BlockSpec((1, O, HW), lambda n: (n, 0, 0)))

    # TODO(synk): for large feature maps the (1, K, HW) / (1, O, HW) blocks
    # should additionally be tiled over HW (with two-pass IN stats) to stay
    # inside v7x's 64 MiB VMEM; at these shapes everything fits comfortably.
    out = pl.pallas_call(
        functools.partial(_conv_kernel, norm=norm, relu=relu, tanh=tanh,
                          add_res=add_res),
        grid=(N,),
        in_specs=in_specs,
        out_specs=pl.BlockSpec((1, O, HW), lambda n: (n, 0, 0)),
        out_shape=jax.ShapeDtypeStruct((N, O, HW), x.dtype),
        compiler_params=pltpu.CompilerParams(
            dimension_semantics=("parallel",)),
    )(*inputs)
    return out.reshape(N, O, Ho, Wo)


def _dilate(x, s):
    N, C, H, W = x.shape
    out = jnp.zeros((N, C, (H - 1) * s + 1, (W - 1) * s + 1), x.dtype)
    return out.at[:, :, ::s, ::s].set(x)


def conv_transpose2d_fused(x, w_t, stride, pad, *, norm, relu, scale, shift):
    # w_t: (Cin, Cout, kh, kw) (PyTorch ConvTranspose2d layout), bias-free.
    # TODO(synk): zero-dilation wastes ~4x MACs; a 4-way sub-pixel
    # decomposition (one small conv per output parity) would avoid it.
    k = w_t.shape[2]
    xd = _dilate(x, stride)
    w_conv = jnp.flip(w_t, axis=(2, 3)).transpose(1, 0, 2, 3)  # (Cout, Cin, kh, kw)
    return conv2d_fused(xd, w_conv, stride=1, pad=k - 1 - pad,
                        norm=norm, relu=relu, scale=scale, shift=shift)


# ----------------------------------------------------------------------------
# Fused attention block kernel (qkv projection + softmax + output, per image)
# ----------------------------------------------------------------------------
def _attention_kernel(x_ref, wqkv_ref, bqkv_ref, gamma_ref, o_ref, *, c8):
    x = x_ref[0]                                               # (C, HW)
    qkv = jnp.dot(wqkv_ref[...], x,
                  preferred_element_type=jnp.float32) + bqkv_ref[...]
    q = qkv[:c8]                                               # (C/8, HW)
    k = qkv[c8:2 * c8]                                         # (C/8, HW)
    v = qkv[2 * c8:]                                           # (C,   HW)
    # scores[i, j] = sum_c q[c, i] * k[c, j]   (PyTorch bmm(query^T, key))
    scores = jnp.dot(q.T, k, preferred_element_type=jnp.float32)   # (HW, HW)
    scores = scores - jnp.max(scores, axis=-1, keepdims=True)
    e = jnp.exp(scores)
    p = e * pl.reciprocal(jnp.sum(e, axis=-1, keepdims=True), approx=True)
    # attended[c, i] = sum_j v[c, j] * p[i, j]   (bmm(value, attn^T)), no
    # explicit HWxHW transpose.
    att = jax.lax.dot_general(v, p, (((1,), (1,)), ((), ())),
                              preferred_element_type=jnp.float32)   # (C, HW)
    o_ref[0] = (gamma_ref[0] * att + x).astype(o_ref.dtype)


def attention_block(x, p):
    # TODO(synk): the full HWxHW score matrix lives in VMEM per image; for
    # large feature maps (v7x 64 MiB VMEM) this needs flash-style query
    # tiling with online softmax.
    N, C, H, W = x.shape
    HW = H * W
    C8 = C // 8
    Ct = 2 * C8 + C
    wqkv = jnp.concatenate([p['wq'].reshape(C8, C),
                            p['wk'].reshape(C8, C),
                            p['wv'].reshape(C, C)], axis=0)        # (Ct, C)
    bqkv = jnp.concatenate([p['bq'], p['bk'], p['bv']]).reshape(Ct, 1)
    x3 = x.reshape(N, C, HW)
    out = pl.pallas_call(
        functools.partial(_attention_kernel, c8=C8),
        grid=(N,),
        in_specs=[pl.BlockSpec((1, C, HW), lambda n: (n, 0, 0)),
                  pl.BlockSpec((Ct, C), lambda n: (0, 0)),
                  pl.BlockSpec((Ct, 1), lambda n: (0, 0)),
                  pl.BlockSpec(memory_space=pltpu.MemorySpace.SMEM)],
        out_specs=pl.BlockSpec((1, C, HW), lambda n: (n, 0, 0)),
        out_shape=jax.ShapeDtypeStruct((N, C, HW), x.dtype),
        compiler_params=pltpu.CompilerParams(
            dimension_semantics=("parallel",)),
    )(x3, wqkv, bqkv, p['gamma'])
    return out.reshape(N, C, H, W)


# ----------------------------------------------------------------------------
# Generator forward
# ----------------------------------------------------------------------------
def generator_forward(x, c, params):
    # TODO(synk): InstanceNorm2d running-stat updates (track_running_stats)
    # are a training side effect with no effect on this forward output; not
    # reproduced.
    N, _, H, W = x.shape
    c_map = jnp.broadcast_to(c[:, :, None, None],
                             (N, c.shape[1], H, W)).astype(x.dtype)
    h = jnp.concatenate([x, c_map], axis=1)

    st = params['stem']
    h = conv2d_fused(h, st['w'], stride=1, pad=3, norm=True, relu=True,
                     scale=st['g'], shift=st['b'])

    for layer in params['down']:
        h = conv2d_fused(h, layer['w'], stride=2, pad=1, norm=True, relu=True,
                         scale=layer['g'], shift=layer['b'])

    for blk in params['blocks']:
        r = blk['res']
        t = conv2d_fused(h, r['w1'], stride=1, pad=1, norm=True, relu=True,
                         scale=r['g1'], shift=r['b1'])
        h = conv2d_fused(t, r['w2'], stride=1, pad=1, norm=True, relu=False,
                         scale=r['g2'], shift=r['b2'], residual=h)
        h = attention_block(h, blk['attn'])

    for layer in params['up']:
        h = conv_transpose2d_fused(h, layer['w'], stride=2, pad=1,
                                   norm=True, relu=True,
                                   scale=layer['g'], shift=layer['b'])

    h = conv2d_fused(h, params['out_w'], stride=1, pad=3, tanh=True)
    return h


# ----------------------------------------------------------------------------
# Deterministic parameter init (shapes follow the PyTorch __init__)
# ----------------------------------------------------------------------------
def init_params(key, conv_dim=16, c_dim=5, repeat_num=2):
    it = iter(jax.random.split(key, 256))

    def nrm(shape, scale=0.05):
        return (scale * jax.random.normal(next(it), shape)).astype(jnp.float32)

    def in_params(ch):
        return (jnp.ones((ch,), jnp.float32) + nrm((ch,), 0.02),
                nrm((ch,), 0.02))

    params = {}
    g, b = in_params(conv_dim)
    params['stem'] = {'w': nrm((conv_dim, 3 + c_dim, 7, 7)), 'g': g, 'b': b}

    cur = conv_dim
    params['down'] = []
    for _ in range(2):
        g, b = in_params(cur * 2)
        params['down'].append({'w': nrm((cur * 2, cur, 4, 4)), 'g': g, 'b': b})
        cur *= 2

    params['blocks'] = []
    for _ in range(repeat_num):
        g1, b1 = in_params(cur)
        g2, b2 = in_params(cur)
        res = {'w1': nrm((cur, cur, 3, 3)), 'g1': g1, 'b1': b1,
               'w2': nrm((cur, cur, 3, 3)), 'g2': g2, 'b2': b2}
        # gamma is zero-init in PyTorch; use 0.1 here so the attention path is
        # actually exercised by the kernel.
        attn = {'wq': nrm((cur // 8, cur, 1, 1)), 'bq': nrm((cur // 8,)),
                'wk': nrm((cur // 8, cur, 1, 1)), 'bk': nrm((cur // 8,)),
                'wv': nrm((cur, cur, 1, 1)), 'bv': nrm((cur,)),
                'gamma': jnp.full((1,), 0.1, jnp.float32)}
        params['blocks'].append({'res': res, 'attn': attn})

    params['up'] = []
    for _ in range(2):
        g, b = in_params(cur // 2)
        # ConvTranspose2d weight layout: (in, out, kh, kw)
        params['up'].append({'w': nrm((cur, cur // 2, 4, 4)), 'g': g, 'b': b})
        cur //= 2

    params['out_w'] = nrm((3, cur, 7, 7))
    return params


if __name__ == "__main__":
    key = jax.random.PRNGKey(0)
    kp, kx, kc = jax.random.split(key, 3)
    # Small Generator config: conv_dim=16, c_dim=5, repeat_num=2.
    params = init_params(kp, conv_dim=16, c_dim=5, repeat_num=2)
    x = jax.random.normal(kx, (2, 3, 16, 16), jnp.float32)
    c = jax.random.normal(kc, (2, 5), jnp.float32)

    out = generator_forward(x, c, params)
    out = jax.block_until_ready(out)
    assert out.shape == (2, 3, 16, 16), out.shape
    assert bool(jnp.all(jnp.isfinite(out)))
    print("KERNEL_OK")
</pallas_src>

<mosaic_0001>
module attributes {stable_mosaic.version = 11 : i64} {
  func.func @_conv_kernel(%arg0: i32, %arg1: memref<16x392xf32, #tpu.memory_space<vmem>>, %arg2: memref<1x392x256xf32, #tpu.memory_space<vmem>>, %arg3: memref<16x1xf32, #tpu.memory_space<vmem>>, %arg4: memref<16x1xf32, #tpu.memory_space<vmem>>, %arg5: memref<1x16x256xf32, #tpu.memory_space<vmem>>) attributes {dimension_semantics = [#tpu.dimension_semantics<parallel>], iteration_bounds = array<i64: 2>, scalar_prefetch = 0 : i64, scratch_operands = 0 : i64, tpu.core_type = #tpu.core_type<tc>, window_params = [{pipeline_mode = #tpu.pipeline_mode<synchronous>, transform_indices = @transform_0, window_bounds = array<i64: 16, 392>}, {transform_indices = @transform_1, window_bounds = array<i64: 1, 392, 256>}, {pipeline_mode = #tpu.pipeline_mode<synchronous>, transform_indices = @transform_2, window_bounds = array<i64: 16, 1>}, {pipeline_mode = #tpu.pipeline_mode<synchronous>, transform_indices = @transform_3, window_bounds = array<i64: 16, 1>}, {transform_indices = @transform_4, window_bounds = array<i64: 1, 16, 256>}]} {
    %c0 = arith.constant 0 : index
    %c0_0 = arith.constant 0 : index
    %0 = vector.load %arg1[%c0, %c0_0] : memref<16x392xf32, #tpu.memory_space<vmem>>, vector<16x392xf32>
    %c0_1 = arith.constant 0 : index
    %c0_2 = arith.constant 0 : index
    %c0_3 = arith.constant 0 : index
    %1 = vector.load %arg2[%c0_1, %c0_2, %c0_3] : memref<1x392x256xf32, #tpu.memory_space<vmem>>, vector<1x392x256xf32>
    %2 = vector.shape_cast %1 : vector<1x392x256xf32> to vector<392x256xf32>
    %cst = arith.constant dense<0.000000e+00> : vector<16x256xf32>
    %3 = tpu.matmul %0, %2, %cst {dimension_numbers = #tpu.dot_dimension_numbers<[1], [0], [0], [1], [0, 0, 1, 1], [], []>} : vector<16x392xf32>, vector<392x256xf32>, vector<16x256xf32> -> vector<16x256xf32>
    %cst_4 = arith.constant dense<0.000000e+00> : vector<16xf32>
    %4 = vector.multi_reduction <add>, %3, %cst_4 [1] : vector<16x256xf32> to vector<16xf32>
    %5 = vector.shape_cast %4 : vector<16xf32> to vector<16x1xf32>
    %cst_5 = arith.constant 2.560000e+02 : f32
    %6 = vector.broadcast %cst_5 : f32 to vector<16x1xf32>
    %7 = arith.divf %5, %6 : vector<16x1xf32>
    %8 = vector.broadcast %7 : vector<16x1xf32> to vector<16x256xf32>
    %9 = arith.subf %3, %8 : vector<16x256xf32>
    %10 = arith.mulf %9, %9 : vector<16x256xf32>
    %cst_6 = arith.constant dense<0.000000e+00> : vector<16xf32>
    %11 = vector.multi_reduction <add>, %10, %cst_6 [1] : vector<16x256xf32> to vector<16xf32>
    %12 = vector.shape_cast %11 : vector<16xf32> to vector<16x1xf32>
    %cst_7 = arith.constant 2.560000e+02 : f32
    %13 = vector.broadcast %cst_7 : f32 to vector<16x1xf32>
    %14 = arith.divf %12, %13 : vector<16x1xf32>
    %cst_8 = arith.constant 9.99999974E-6 : f32
    %15 = vector.broadcast %cst_8 : f32 to vector<16x1xf32>
    %16 = arith.addf %14, %15 : vector<16x1xf32>
    %17 = math.rsqrt %16 : vector<16x1xf32>
    %18 = vector.broadcast %17 : vector<16x1xf32> to vector<16x256xf32>
    %19 = arith.mulf %9, %18 : vector<16x256xf32>
    %c0_9 = arith.constant 0 : index
    %c0_10 = arith.constant 0 : index
    %20 = vector.load %arg3[%c0_9, %c0_10] : memref<16x1xf32, #tpu.memory_space<vmem>>, vector<16x1xf32>
    %21 = vector.broadcast %20 : vector<16x1xf32> to vector<16x256xf32>
    %22 = arith.mulf %19, %21 : vector<16x256xf32>
    %c0_11 = arith.constant 0 : index
    %c0_12 = arith.constant 0 : index
    %23 = vector.load %arg4[%c0_11, %c0_12] : memref<16x1xf32, #tpu.memory_space<vmem>>, vector<16x1xf32>
    %24 = vector.broadcast %23 : vector<16x1xf32> to vector<16x256xf32>
    %25 = arith.addf %22, %24 : vector<16x256xf32>
    %cst_13 = arith.constant 0.000000e+00 : f32
    %26 = vector.broadcast %cst_13 : f32 to vector<16x256xf32>
    %27 = arith.maximumf %25, %26 : vector<16x256xf32>
    %c0_14 = arith.constant 0 : index
    %c0_15 = arith.constant 0 : index
    %c0_16 = arith.constant 0 : index
    %28 = vector.load %arg5[%c0_14, %c0_15, %c0_16] : memref<1x16x256xf32, #tpu.memory_space<vmem>>, vector<1x16x256xf32>
    %29 = vector.shape_cast %28 : vector<1x16x256xf32> to vector<16x256xf32>
    %30 = vector.shape_cast %27 : vector<16x256xf32> to vector<1x16x256xf32>
    tpu.vector_store %arg5[%c0_14, %c0_15, %c0_16], %30 {strides = array<i32>} : memref<1x16x256xf32, #tpu.memory_space<vmem>>, vector<1x16x256xf32>,
    return
  }
  func.func @transform_0(%arg0: i32) -> (i32, i32) {
    %c0_i32 = arith.constant 0 : i32
    %c0_i32_0 = arith.constant 0 : i32
    %c0_i32_1 = arith.constant 0 : i32
    return %c0_i32, %c0_i32_0 : i32, i32
  }
  func.func @transform_1(%arg0: i32) -> (i32, i32, i32) {
    %c0_i32 = arith.constant 0 : i32
    %c0_i32_0 = arith.constant 0 : i32
    %c0_i32_1 = arith.constant 0 : i32
    return %arg0, %c0_i32, %c0_i32_0 : i32, i32, i32
  }
  func.func @transform_2(%arg0: i32) -> (i32, i32) {
    %c0_i32 = arith.constant 0 : i32
    %c0_i32_0 = arith.constant 0 : i32
    %c0_i32_1 = arith.constant 0 : i32
    return %c0_i32, %c0_i32_0 : i32, i32
  }
  func.func @transform_3(%arg0: i32) -> (i32, i32) {
    %c0_i32 = arith.constant 0 : i32
    %c0_i32_0 = arith.constant 0 : i32
    %c0_i32_1 = arith.constant 0 : i32
    return %c0_i32, %c0_i32_0 : i32, i32
  }
  func.func @transform_4(%arg0: i32) -> (i32, i32, i32) {
    %c0_i32 = arith.constant 0 : i32
    %c0_i32_0 = arith.constant 0 : i32
    %c0_i32_1 = arith.constant 0 : i32
    return %arg0, %c0_i32, %c0_i32_0 : i32, i32, i32
  }
}

</mosaic_0001>

<llo_original>
// kernel: tpu_custom_call.1
$region0: #{tpu_custom_call.1}
  #allocation0 [shape = 'u32[]', space=smem, size = 0x4, offset = 0x4, fixed_abs, tag = 'smem constant byte address 0x4 - core index']
  #allocation1 [shape = 'u32[144,128]{1,0:T(1,128)}', space=vmem, size = 0x12000, scoped, tag = 'internal scratch']
  %s0 = inlined_call_operand.hbm [shape: f32[16,392], index: 0, kind: input, shape index: {}]
  %s1 = inlined_call_operand.hbm [shape: f32[2,392,256], index: 1, kind: input, shape index: {}]
  %s2 = inlined_call_operand.vmem [shape: f32[16,1], index: 2, kind: input, shape index: {}]
  %s3 = inlined_call_operand.vmem [shape: f32[16,1], index: 3, kind: input, shape index: {}]
  %s4 = inlined_call_operand.hbm [shape: f32[2,16,256], index: 4, kind: output, shape index: {}]
  %s5 = sld [smem:[#allocation0]]
  $region57: #{tpu_custom_call.1} parent=0
    _
  %s7 = ssub.s32 1, %s5
  %s8 = scalar_select 0, %s7, %s5
  $region1: #{tpu_custom_call.1} parent=0
    #allocation2 [shape = 'u8[32768]{0}', space=vmem, size = 0x8000, scoped, tag = 'input window, operand 0, single buffered']
    #allocation3 [shape = 's32[2]{0}', space=sflag, size = 0x8, scoped, tag = 'scoped memory for tpu_custom_call.1']
    #allocation4 [shape = 's32[2]{0}', space=sflag, size = 0x8, scoped, tag = 'scoped memory for tpu_custom_call.1']
    #allocation5 [shape = 'u8[802816]{0}', space=vmem, size = 0xc4000, scoped, tag = 'input window, operand 1']
    #allocation6 [shape = 's32[2]{0}', space=sflag, size = 0x8, scoped, tag = 'scoped memory for tpu_custom_call.1']
    #allocation7 [shape = 'u8[32768]{0}', space=vmem, size = 0x8000, scoped, tag = 'output window, operand 0']
    %9 = vsyncpa [#allocation3], 0
    %10 = vsyncpa [#allocation6], 0
    %s11 = scalar_lea.sflag [#allocation6], 1
    %12 = vsyncpa %s11, 0
    %13 = vsyncpa [#allocation4], 0
    %s14 = scalar_lea.sflag [#allocation4], 1
    %15 = vsyncpa %s14, 0
    loop: start=0, step=1, limit=4
    $region2: #{tpu_custom_call.1} parent=1 // loop_pre_header
      _
    $region3: #{tpu_custom_call.1} parent=1 // loop_header
      %s17 = sphi 0, %s21
      %p18 = scmp.ge.s32.totalorder %s17, 4
      %s25 = sphi 0, %s25
      %s27 = sphi 0, %s25
      %s28 = sphi 0, %s27
      %s42 = sphi 0, %s28
      %s48 = sphi 0, %s50
      %s51 = sphi 0, %s48
      %s52 = sphi 0, %s51
      %s68 = sphi 0, %s52
      %s72 = sphi 0, %s72
      %s74 = sphi 0, %s72
      %s75 = sphi 0, %s74
      %s89 = sphi 0, %s75
      %s93 = sphi 0, %s93
      %s95 = sphi 0, %s93
      %s96 = sphi 0, %s95
      %s110 = sphi 0, %s96
      %s116 = sphi 0, %s118
      %s119 = sphi 0, %s116
      %s120 = sphi 0, %s119
      %s136 = sphi 0, %s120
    $region4: #{tpu_custom_call.1} parent=1 // loop_header_branch
      %20 = sbr.rel (%p18) target = $region8
    $region5: #{tpu_custom_call.1} parent=1 // loop_body
      %s22 = ssub.s32 %s17, 1
      %s23 = ssub.s32 %s17, 2
      %s24 = sadd.s32 %s17, 1
      %s26 = sadd.s32 %s25, 1
      %p29 = scmp.eq.s32.totalorder %s17, 1
      %p30 = scmp.ne.s32.totalorder %s25, %s27
      %p31 = scmp.eq.s32.totalorder %s17, 0
      %p32 = por %p30, %p31
      %p33 = scmp.ne.s32.totalorder %s25, %s27
      %p34 = scmp.eq.s32.totalorder %s22, 1
      %p35 = por %p33, %p34
      %p36 = scmp.ne.s32.totalorder %s27, %s28
      %p37 = scmp.eq.s32.totalorder %s22, 0
      %p38 = por %p36, %p37
      %p39 = scmp.ne.s32.totalorder %s27, %s28
      %p40 = scmp.eq.s32.totalorder %s23, 1
      %p41 = por %p39, %p40
      %p43 = scmp.ne.s32.totalorder %s28, %s42
      %p44 = scmp.eq.s32.totalorder %s23, 0
      %p45 = por %p43, %p44
      %s46 = ssub.s32 %s17, %s24
      %p47 = scmp.eq.s32.totalorder %s46, 0
      %s49 = sadd.s32 %s48, 1
      %s50 = scalar_select %p47, %s48, %s49
      %p53 = pneg %p47
      %p54 = scmp.eq.s32.totalorder %s17, 1
      %p55 = por %p53, %p54
      %p56 = scmp.ne.s32.totalorder %s48, %s51
      %p57 = scmp.eq.s32.totalorder %s17, 0
      %p58 = por %p56, %p57
      %p59 = scmp.ne.s32.totalorder %s48, %s51
      %p60 = scmp.eq.s32.totalorder %s22, 1
      %p61 = por %p59, %p60
      %p62 = scmp.ne.s32.totalorder %s51, %s52
      %p63 = scmp.eq.s32.totalorder %s22, 0
      %p64 = por %p62, %p63
      %p65 = scmp.ne.s32.totalorder %s51, %s52
      %p66 = scmp.eq.s32.totalorder %s23, 1
      %p67 = por %p65, %p66
      %p69 = scmp.ne.s32.totalorder %s52, %s68
      %p70 = scmp.eq.s32.totalorder %s23, 0
      %p71 = por %p69, %p70
      %s73 = sadd.s32 %s72, 1
      %p76 = scmp.eq.s32.totalorder %s17, 1
      %p77 = scmp.ne.s32.totalorder %s72, %s74
      %p78 = scmp.eq.s32.totalorder %s17, 0
      %p79 = por %p77, %p78
      %p80 = scmp.ne.s32.totalorder %s72, %s74
      %p81 = scmp.eq.s32.totalorder %s22, 1
      %p82 = por %p80, %p81
      %p83 = scmp.ne.s32.totalorder %s74, %s75
      %p84 = scmp.eq.s32.totalorder %s22, 0
      %p85 = por %p83, %p84
      %p86 = scmp.ne.s32.totalorder %s74, %s75
      %p87 = scmp.eq.s32.totalorder %s23, 1
      %p88 = por %p86, %p87
      %p90 = scmp.ne.s32.totalorder %s75, %s89
      %p91 = scmp.eq.s32.totalorder %s23, 0
      %p92 = por %p90, %p91
      %s94 = sadd.s32 %s93, 1
      %p97 = scmp.eq.s32.totalorder %s17, 1
      %p98 = scmp.ne.s32.totalorder %s93, %s95
      %p99 = scmp.eq.s32.totalorder %s17, 0
      %p100 = por %p98, %p99
      %p101 = scmp.ne.s32.totalorder %s93, %s95
      %p102 = scmp.eq.s32.totalorder %s22, 1
      %p103 = por %p101, %p102
      %p104 = scmp.ne.s32.totalorder %s95, %s96
      %p105 = scmp.eq.s32.totalorder %s22, 0
      %p106 = por %p104, %p105
      %p107 = scmp.ne.s32.totalorder %s95, %s96
      %p108 = scmp.eq.s32.totalorder %s23, 1
      %p109 = por %p107, %p108
      %p111 = scmp.ne.s32.totalorder %s96, %s110
      %p112 = scmp.eq.s32.totalorder %s23, 0
      %p113 = por %p111, %p112
      %s114 = ssub.s32 %s17, %s24
      %p115 = scmp.eq.s32.totalorder %s114, 0
      %s117 = sadd.s32 %s116, 1
      %s118 = scalar_select %p115, %s116, %s117
      %p121 = pneg %p115
      %p122 = scmp.eq.s32.totalorder %s17, 1
      %p123 = por %p121, %p122
      %p124 = scmp.ne.s32.totalorder %s116, %s119
      %p125 = scmp.eq.s32.totalorder %s17, 0
      %p126 = por %p124, %p125
      %p127 = scmp.ne.s32.totalorder %s116, %s119
      %p128 = scmp.eq.s32.totalorder %s22, 1
      %p129 = por %p127, %p128
      %p130 = scmp.ne.s32.totalorder %s119, %s120
      %p131 = scmp.eq.s32.totalorder %s22, 0
      %p132 = por %p130, %p131
      %p133 = scmp.ne.s32.totalorder %s119, %s120
      %p134 = scmp.eq.s32.totalorder %s23, 1
      %p135 = por %p133, %p134
      %p137 = scmp.ne.s32.totalorder %s120, %s136
      %p138 = scmp.eq.s32.totalorder %s23, 0
      %p139 = por %p137, %p138
      %p140 = scmp.le.s32.totalorder 1, %s17
      %p141 = scmp.lt.s32.totalorder %s17, 3
      %p142 = pnand %p140, %p141
      %p143 = pneg %p142
      // Predicated region
      $region9: #{tpu_custom_call.1} parent=5 // pred_check
        _
      $region10: #{tpu_custom_call.1} parent=5 // pred_check_branch
        %145 = sbr.rel (%p142) target = $region12
      $region11: #{tpu_custom_call.1} parent=5 // pred_region
        %s146 = ssub.s32 %s17, 1
        // Predicated region
        $region13: #{tpu_custom_call.1} parent=11 // pred_check
          %p147 = pneg %p38
        $region14: #{tpu_custom_call.1} parent=11 // pred_check_branch
          %149 = sbr.rel (%p147) target = $region16
        $region15: #{tpu_custom_call.1} parent=11 // pred_region
          %s151 = ssub.s32 1024, 1024
          %152 = vsyncadd [#allocation3], %s151
          %s153 = sshll.u32 [#allocation2], 4
          %s154 = int_to_ptr.vmem [resolvable:$true] %s153
          %159 = dma.hbm_to_vmem [thread:$0]  %s0, 1024, %s154, [#allocation3], 512, 512, 32
        $region16: #{tpu_custom_call.1} parent=11 // pred_fallthru
          _
        // Predicated region
        $region17: #{tpu_custom_call.1} parent=11 // pred_check
          %p160 = pneg %p85
        $region18: #{tpu_custom_call.1} parent=11 // pred_check_branch
          %162 = sbr.rel (%p160) target = $region20
        $region19: #{tpu_custom_call.1} parent=11 // pred_region
          _
        $region20: #{tpu_custom_call.1} parent=11 // pred_fallthru
          _
        // Predicated region
        $region21: #{tpu_custom_call.1} parent=11 // pred_check
          %p163 = pneg %p106
        $region22: #{tpu_custom_call.1} parent=11 // pred_check_branch
          %165 = sbr.rel (%p163) target = $region24
        $region23: #{tpu_custom_call.1} parent=11 // pred_region
          _
        $region24: #{tpu_custom_call.1} parent=11 // pred_fallthru
          _
      $region12: #{tpu_custom_call.1} parent=5 // pred_fallthru
        _
      %p166 = scmp.lt.s32.totalorder %s17, 2
      // Predicated region
      $region25: #{tpu_custom_call.1} parent=5 // pred_check
        %p167 = pneg %p166
      $region26: #{tpu_custom_call.1} parent=5 // pred_check_branch
        %169 = sbr.rel (%p167) target = $region28
      $region27: #{tpu_custom_call.1} parent=5 // pred_region
        // Predicated region
        $region29: #{tpu_custom_call.1} parent=27 // pred_check
          %p170 = pneg %p58
        $region30: #{tpu_custom_call.1} parent=27 // pred_check_branch
          %172 = sbr.rel (%p170) target = $region32
        $region31: #{tpu_custom_call.1} parent=27 // pred_region
          %s173 = sand.u32 %s48, 1
          %s174 = scalar_lea.sflag [#allocation6], %s173
          %s175 = sand.u32 %s48, 1
          %s176 = smul.addr %s175, 784
          %s177 = scalar_lea.vmem [#allocation5], %s176
          %s179 = ssub.s32 12544, 12544
          %180 = vsyncadd %s174, %s179
          %s181 = smul.addr %s17, 98
          %s182 = smul.addr %s181, 128
          %s183 = scalar_lea.hbm %s1, %s182
          %s184 = sshll.u32 %s177, 4
          %s185 = int_to_ptr.vmem [resolvable:$true] %s184
          %190 = dma.hbm_to_vmem [thread:$0]  %s183, 12544, %s185, %s174, 256, 256, 16
        $region32: #{tpu_custom_call.1} parent=27 // pred_fallthru
          _
      $region28: #{tpu_custom_call.1} parent=5 // pred_fallthru
        _
      %p191 = scmp.le.s32.totalorder 1, %s17
      %p192 = scmp.lt.s32.totalorder %s17, 3
      %p193 = pnand %p191, %p192
      %p194 = pneg %p193
      // Predicated region
      $region33: #{tpu_custom_call.1} parent=5 // pred_check
        _
      $region34: #{tpu_custom_call.1} parent=5 // pred_check_branch
        %196 = sbr.rel (%p193) target = $region36
      $region35: #{tpu_custom_call.1} parent=5 // pred_region
        %s197 = ssub.s32 %s17, 1
        // Predicated region
        $region37: #{tpu_custom_call.1} parent=35 // pred_check
          %p198 = pneg %p38
        $region38: #{tpu_custom_call.1} parent=35 // pred_check_branch
          %200 = sbr.rel (%p198) target = $region40
        $region39: #{tpu_custom_call.1} parent=35 // pred_region
          %201 = dma.done [#allocation3], 1024
        $region40: #{tpu_custom_call.1} parent=35 // pred_fallthru
          _
        %s202 = sand.u32 %s51, 1
        %s203 = scalar_lea.sflag [#allocation6], %s202
        %s204 = sand.u32 %s51, 1
        %s205 = smul.addr %s204, 784
        %s206 = scalar_lea.vmem [#allocation5], %s205
        // Predicated region
        $region41: #{tpu_custom_call.1} parent=35 // pred_check
          %p207 = pneg %p64
        $region42: #{tpu_custom_call.1} parent=35 // pred_check_branch
          %209 = sbr.rel (%p207) target = $region44
        $region43: #{tpu_custom_call.1} parent=35 // pred_region
          %210 = dma.done %s203, 12544
        $region44: #{tpu_custom_call.1} parent=35 // pred_fallthru
          _
        %p211 = pneg %p38
        %p212 = pneg %p35
        %s213 = sand.u32 %s51, 1
        %s214 = scalar_lea.sflag [#allocation6], %s213
        %s215 = sand.u32 %s51, 1
        %s216 = smul.addr %s215, 784
        %s217 = scalar_lea.vmem [#allocation5], %s216
        %p218 = pneg %p64
        %p219 = pneg %p61
        %p220 = pneg %p85
        %p221 = pneg %p82
        %p222 = pneg %p106
        %p223 = pneg %p103
        %p224 = pneg %p132
        %p225 = pneg %p129
        %s226 = sand.u32 %s119, 1
        %s227 = scalar_lea.sflag [#allocation4], %s226
        %s228 = sand.u32 %s119, 1
        %s229 = smul.addr %s228, 32
        %s230 = scalar_lea.vmem [#allocation7], %s229
        %v231 = vld [vmem:[#allocation2] sm:$0xff]
        %v232 = vld [vmem:[#allocation2 + $0x8] sm:$0xff]
        %v233 = vld [vmem:[#allocation2 + $0x10] sm:$0xff]
        %v234 = vld [vmem:[#allocation2 + $0x18] sm:$0xff]
        %v235 = vld [vmem:[#allocation2 + $0x20] sm:$0xff]
        %v236 = vld [vmem:[#allocation2 + $0x28] sm:$0xff]
        %v237 = vld [vmem:[#allocation2 + $0x30] sm:$0xff]
        %v238 = vld [vmem:[#allocation2 + $0x38] sm:$0xff]
        %v239 = vld [vmem:[%s206] sm:$0xff]
        %v240 = vld [vmem:[%s206 + $0x8] sm:$0xff]
        %v241 = vld [vmem:[%s206 + $0x10] sm:$0xff]
        %v242 = vld [vmem:[%s206 + $0x18] sm:$0xff]
        %v243 = vld [vmem:[%s206 + $0x20] sm:$0xff]
        %v244 = vld [vmem:[%s206 + $0x28] sm:$0xff]
        %v245 = vld [vmem:[%s206 + $0x30] sm:$0xff]
        %v246 = vld [vmem:[%s206 + $0x38] sm:$0xff]
        %v247 = vld [vmem:[%s206 + $0x40] sm:$0xff]
        %v248 = vld [vmem:[%s206 + $0x48] sm:$0xff]
        %v249 = vld [vmem:[%s206 + $0x50] sm:$0xff]
        %v250 = vld [vmem:[%s206 + $0x58] sm:$0xff]
        %v251 = vld [vmem:[%s206 + $0x60] sm:$0xff]
        %v252 = vld [vmem:[%s206 + $0x68] sm:$0xff]
        %v253 = vld [vmem:[%s206 + $0x70] sm:$0xff]
        %v254 = vld [vmem:[%s206 + $0x78] sm:$0xff]
        %v255 = vld [vmem:[%s206 + $0x80] sm:$0xff]
        %v256 = vld [vmem:[%s206 + $0x88] sm:$0xff]
        %v257 = vld [vmem:[%s206 + $0x90] sm:$0xff]
        %v258 = vld [vmem:[%s206 + $0x98] sm:$0xff]
        %v259 = vld [vmem:[%s206 + $0xa0] sm:$0xff]
        %v260 = vld [vmem:[%s206 + $0xa8] sm:$0xff]
        %v261 = vld [vmem:[%s206 + $0xb0] sm:$0xff]
        %v262 = vld [vmem:[%s206 + $0xb8] sm:$0xff]
        %v263 = vld [vmem:[%s206 + $0xc0] sm:$0xff]
        %v264 = vld [vmem:[%s206 + $0xc8] sm:$0xff]
        %v265 = vld [vmem:[%s206 + $0xd0] sm:$0xff]
        %v266 = vld [vmem:[%s206 + $0xd8] sm:$0xff]
        %v267 = vld [vmem:[%s206 + $0xe0] sm:$0xff]
        %v268 = vld [vmem:[%s206 + $0xe8] sm:$0xff]
        %v269 = vld [vmem:[%s206 + $0xf0] sm:$0xff]
        %v270 = vld [vmem:[%s206 + $0xf8] sm:$0xff]
        %v271 = vld [vmem:[%s206 + $0x100] sm:$0xff]
        %v272 = vld [vmem:[%s206 + $0x108] sm:$0xff]
        %v273 = vld [vmem:[%s206 + $0x110] sm:$0xff]
        %v274 = vld [vmem:[%s206 + $0x118] sm:$0xff]
        %v275 = vld [vmem:[%s206 + $0x120] sm:$0xff]
        %v276 = vld [vmem:[%s206 + $0x128] sm:$0xff]
        %v277 = vld [vmem:[%s206 + $0x130] sm:$0xff]
        %v278 = vld [vmem:[%s206 + $0x138] sm:$0xff]
        %v279 = vld [vmem:[%s206 + $0x140] sm:$0xff]
        %v280 = vld [vmem:[%s206 + $0x148] sm:$0xff]
        %v281 = vld [vmem:[%s206 + $0x150] sm:$0xff]
        %v282 = vld [vmem:[%s206 + $0x158] sm:$0xff]
        %v283 = vld [vmem:[%s206 + $0x160] sm:$0xff]
        %v284 = vld [vmem:[%s206 + $0x168] sm:$0xff]
        %v285 = vld [vmem:[%s206 + $0x170] sm:$0xff]
        %v286 = vld [vmem:[%s206 + $0x178] sm:$0xff]
        %v287 = vld [vmem:[%s206 + $0x180] sm:$0xff]
        %v288 = vld [vmem:[%s206 + $0x188] sm:$0xff]
        %v289 = vld [vmem:[%s206 + $0x190] sm:$0xff]
        %v290 = vld [vmem:[%s206 + $0x198] sm:$0xff]
        %v291 = vld [vmem:[%s206 + $0x1a0] sm:$0xff]
        %v292 = vld [vmem:[%s206 + $0x1a8] sm:$0xff]
        %v293 = vld [vmem:[%s206 + $0x1b0] sm:$0xff]
        %v294 = vld [vmem:[%s206 + $0x1b8] sm:$0xff]
        %v295 = vld [vmem:[%s206 + $0x1c0] sm:$0xff]
        %v296 = vld [vmem:[%s206 + $0x1c8] sm:$0xff]
        %v297 = vld [vmem:[%s206 + $0x1d0] sm:$0xff]
        %v298 = vld [vmem:[%s206 + $0x1d8] sm:$0xff]
        %v299 = vld [vmem:[%s206 + $0x1e0] sm:$0xff]
        %v300 = vld [vmem:[%s206 + $0x1e8] sm:$0xff]
        %v301 = vld [vmem:[%s206 + $0x1f0] sm:$0xff]
        %v302 = vld [vmem:[%s206 + $0x1f8] sm:$0xff]
        %v303 = vld [vmem:[%s206 + $0x200] sm:$0xff]
        %v304 = vld [vmem:[%s206 + $0x208] sm:$0xff]
        %v305 = vld [vmem:[%s206 + $0x210] sm:$0xff]
        %v306 = vld [vmem:[%s206 + $0x218] sm:$0xff]
        %v307 = vld [vmem:[%s206 + $0x220] sm:$0xff]
        %v308 = vld [vmem:[%s206 + $0x228] sm:$0xff]
        %v309 = vld [vmem:[%s206 + $0x230] sm:$0xff]
        %v310 = vld [vmem:[%s206 + $0x238] sm:$0xff]
        %v311 = vld [vmem:[%s206 + $0x240] sm:$0xff]
        %v312 = vld [vmem:[%s206 + $0x248] sm:$0xff]
        %v313 = vld [vmem:[%s206 + $0x250] sm:$0xff]
        %v314 = vld [vmem:[%s206 + $0x258] sm:$0xff]
        %v315 = vld [vmem:[%s206 + $0x260] sm:$0xff]
        %v316 = vld [vmem:[%s206 + $0x268] sm:$0xff]
        %v317 = vld [vmem:[%s206 + $0x270] sm:$0xff]
        %v318 = vld [vmem:[%s206 + $0x278] sm:$0xff]
        %v319 = vld [vmem:[%s206 + $0x280] sm:$0xff]
        %v320 = vld [vmem:[%s206 + $0x288] sm:$0xff]
        %v321 = vld [vmem:[%s206 + $0x290] sm:$0xff]
        %v322 = vld [vmem:[%s206 + $0x298] sm:$0xff]
        %v323 = vld [vmem:[%s206 + $0x2a0] sm:$0xff]
        %v324 = vld [vmem:[%s206 + $0x2a8] sm:$0xff]
        %v325 = vld [vmem:[%s206 + $0x2b0] sm:$0xff]
        %v326 = vld [vmem:[%s206 + $0x2b8] sm:$0xff]
        %v327 = vld [vmem:[%s206 + $0x2c0] sm:$0xff]
        %v328 = vld [vmem:[%s206 + $0x2c8] sm:$0xff]
        %v329 = vld [vmem:[%s206 + $0x2d0] sm:$0xff]
        %v330 = vld [vmem:[%s206 + $0x2d8] sm:$0xff]
        %v331 = vld [vmem:[%s206 + $0x2e0] sm:$0xff]
        %v332 = vld [vmem:[%s206 + $0x2e8] sm:$0xff]
        %v333 = vld [vmem:[%s206 + $0x2f0] sm:$0xff]
        %v334 = vld [vmem:[%s206 + $0x2f8] sm:$0xff]
        %v335 = vld [vmem:[%s206 + $0x300] sm:$0xff]
        %v336 = vld [vmem:[%s206 + $0x308] sm:$0xff]
        %vm337 = vcmask 64512
        %v339 = vsel %vm337, %v234, 0
        %v342 = vsel %vm337, %v238, 0
        %344 = vmatprep.subr.mxu0 %v240
        %345 = vmatpush1.msra.mxu0 %v239
        %346 = vmatprep.subr.mxu0 %v242
        %347 = vmatpush1.msra.mxu0 %v241
        %348 = vmatprep.subr.mxu0 %v244
        %349 = vmatpush1.msra.mxu0 %v243
        %350 = vmatprep.subr.mxu0 %v246
        %351 = vmatpush1.msra.mxu0 %v245
        %352 = vmatprep.subr.mxu0 %v248
        %353 = vmatpush1.msra.mxu0 %v247
        %354 = vmatprep.subr.mxu0 %v250
        %355 = vmatpush1.msra.mxu0 %v249
        %356 = vmatprep.subr.mxu0 %v252
        %357 = vmatpush1.msra.mxu0 %v251
        %358 = vmatprep.subr.mxu0 %v254
        %359 = vmatpush1.msra.mxu0 %v253
        %360 = vmatprep.subr.mxu0 %v256
        %361 = vmatpush1.msra.mxu0 %v255
        %362 = vmatprep.subr.mxu0 %v258
        %363 = vmatpush1.msra.mxu0 %v257
        %364 = vmatprep.subr.mxu0 %v260
        %365 = vmatpush1.msra.mxu0 %v259
        %366 = vmatprep.subr.mxu0 %v262
        %367 = vmatpush1.msra.mxu0 %v261
        %368 = vmatprep.subr.mxu0 %v264
        %369 = vmatpush1.msra.mxu0 %v263
        %370 = vmatprep.subr.mxu0 %v266
        %371 = vmatpush1.msra.mxu0 %v265
        %372 = vmatprep.subr.mxu0 %v268
        %373 = vmatpush1.msra.mxu0 %v267
        %374 = vmatprep.subr.mxu0 %v270
        %375 = vmatpush1.msra.mxu0 %v269
        %376 = vmatprep.subr.mxu0 %v272
        %377 = vmatpush1.msra.mxu0 %v271
        %378 = vmatprep.subr.mxu0 %v274
        %379 = vmatpush1.msra.mxu0 %v273
        %380 = vmatprep.subr.mxu0 %v276
        %381 = vmatpush1.msra.mxu0 %v275
        %382 = vmatprep.subr.mxu0 %v278
        %383 = vmatpush1.msra.mxu0 %v277
        %384 = vmatprep.subr.mxu0 %v280
        %385 = vmatpush1.msra.mxu0 %v279
        %386 = vmatprep.subr.mxu0 %v282
        %387 = vmatpush1.msra.mxu0 %v281
        %388 = vmatprep.subr.mxu0 %v284
        %389 = vmatpush1.msra.mxu0 %v283
        %390 = vmatprep.subr.mxu0 %v286
        %391 = vmatpush1.msra.mxu0 %v285
        %392 = vmatprep.subr.mxu0 %v288
        %393 = vmatpush1.msra.mxu0 %v287
        %394 = vmatprep.subr.mxu0 %v290
        %395 = vmatpush1.msra.mxu0 %v289
        %396 = vmatprep.subr.mxu0 %v292
        %397 = vmatpush1.msra.mxu0 %v291
        %398 = vmatprep.subr.mxu0 %v294
        %399 = vmatpush1.msra.mxu0 %v293
        %400 = vmatprep.subr.mxu0 %v296
        %401 = vmatpush1.msra.mxu0 %v295
        %402 = vmatprep.subr.mxu0 %v298
        %403 = vmatpush1.msra.mxu0 %v297
        %404 = vmatprep.subr.mxu0 %v300
        %405 = vmatpush1.msra.mxu0 %v299
        %406 = vmatprep.subr.mxu0 %v302
        %407 = vmatpush1.msra.mxu0 %v301
        %408 = vmatprep.mubr.f32.mxu0 %v232
        %409 = vmatmul.mubr.f32.gmra.mrb[0].mxu0 %v231
        %v410 = vpop.f32.mrb[0].mxu0
        %v411 = vadd.f32 0.0, %v410
        %v412 = vpop.f32.mrb[0].mxu0
        %v413 = vadd.f32 0.0, %v412
        %414 = vmatprep.mubr.f32.mxu0 %v236
        %415 = vmatmul.mubr.f32.gmra.mrb[0].mxu0 %v235
        %v416 = vpop.f32.mrb[0].mxu0
        %v417 = vadd.f32 0.0, %v416
        %v418 = vpop.f32.mrb[0].mxu0
        %v419 = vadd.f32 0.0, %v418
        %420 = vdwg.mxu0
        %421 = vmatprep.subr.mxu0 %v304
        %422 = vmatpush1.msra.mxu0 %v303
        %423 = vmatprep.subr.mxu0 %v306
        %424 = vmatpush1.msra.mxu0 %v305
        %425 = vmatprep.subr.mxu0 %v308
        %426 = vmatpush1.msra.mxu0 %v307
        %427 = vmatprep.subr.mxu0 %v310
        %428 = vmatpush1.msra.mxu0 %v309
        %429 = vmatprep.subr.mxu0 %v312
        %430 = vmatpush1.msra.mxu0 %v311
        %431 = vmatprep.subr.mxu0 %v314
        %432 = vmatpush1.msra.mxu0 %v313
        %433 = vmatprep.subr.mxu0 %v316
        %434 = vmatpush1.msra.mxu0 %v315
        %435 = vmatprep.subr.mxu0 %v318
        %436 = vmatpush1.msra.mxu0 %v317
        %437 = vmatprep.subr.mxu0 %v320
        %438 = vmatpush1.msra.mxu0 %v319
        %439 = vmatprep.subr.mxu0 %v322
        %440 = vmatpush1.msra.mxu0 %v321
        %441 = vmatprep.subr.mxu0 %v324
        %442 = vmatpush1.msra.mxu0 %v323
        %443 = vmatprep.subr.mxu0 %v326
        %444 = vmatpush1.msra.mxu0 %v325
        %445 = vmatprep.subr.mxu0 %v328
        %446 = vmatpush1.msra.mxu0 %v327
        %447 = vmatprep.subr.mxu0 %v330
        %448 = vmatpush1.msra.mxu0 %v329
        %449 = vmatprep.subr.mxu0 %v332
        %450 = vmatpush1.msra.mxu0 %v331
        %451 = vmatprep.subr.mxu0 %v334
        %452 = vmatpush1.msra.mxu0 %v333
        %453 = vmatprep.subr.mxu0 %v336
        %454 = vmatpush1.msra.mxu0 %v335
        %455 = vmatprep.subr.mxu0 0.0
        %456 = vmatpush1.msra.mxu0 0.0
        %457 = vmatprep.subr.mxu0 0.0
        %458 = vmatpush1.msra.mxu0 0.0
        %459 = vmatprep.subr.mxu0 0.0
        %460 = vmatpush1.msra.mxu0 0.0
        %461 = vmatprep.subr.mxu0 0.0
        %462 = vmatpush1.msra.mxu0 0.0
        %463 = vmatprep.subr.mxu0 0.0
        %464 = vmatpush1.msra.mxu0 0.0
        %465 = vmatprep.subr.mxu0 0.0
        %466 = vmatpush1.msra.mxu0 0.0
        %467 = vmatprep.subr.mxu0 0.0
        %468 = vmatpush1.msra.mxu0 0.0
        %469 = vmatprep.subr.mxu0 0.0
        %470 = vmatpush1.msra.mxu0 0.0
        %471 = vmatprep.subr.mxu0 0.0
        %472 = vmatpush1.msra.mxu0 0.0
        %473 = vmatprep.subr.mxu0 0.0
        %474 = vmatpush1.msra.mxu0 0.0
        %475 = vmatprep.subr.mxu0 0.0
        %476 = vmatpush1.msra.mxu0 0.0
        %477 = vmatprep.subr.mxu0 0.0
        %478 = vmatpush1.msra.mxu0 0.0
        %479 = vmatprep.subr.mxu0 0.0
        %480 = vmatpush1.msra.mxu0 0.0
        %481 = vmatprep.subr.mxu0 0.0
        %482 = vmatpush1.msra.mxu0 0.0
        %483 = vmatprep.subr.mxu0 0.0
        %484 = vmatpush1.msra.mxu0 0.0
        %485 = vmatprep.mubr.f32.mxu0 %v339
        %486 = vmatmul.mubr.f32.gmra.mrb[0].mxu0 %v233
        %v487 = vpop.f32.mrb[0].mxu0
        %v488 = vadd.f32 %v411, %v487
        %v489 = vpop.f32.mrb[0].mxu0
        %v490 = vadd.f32 %v413, %v489
        %491 = vmatprep.mubr.f32.mxu0 %v342
        %492 = vmatmul.mubr.f32.gmra.mrb[0].mxu0 %v237
        %v493 = vpop.f32.mrb[0].mxu0
        %v494 = vadd.f32 %v417, %v493
        %v495 = vpop.f32.mrb[0].mxu0
        %v496 = vadd.f32 %v419, %v495
        %497 = vdwg.mxu0
        %v498 = vadd.f32 %v488, %v490
        %499 = vadd.xlane.f32.xlu0 %v498
        %v500 = vpop.xlane.xlu0 %499
        %v501 = vadd.f32 %v494, %v496
        %502 = vadd.xlane.f32.xlu0 %v501
        %v503 = vpop.xlane.xlu0 %502
        %v504 = vrcp.pop 256.0
        %v505 = vmul.f32 %v500, %v504
        %v506 = vmul.f32 %v503, %v504
        %v507 = vsub.f32 %v488, %v505
        %v508 = vsub.f32 %v490, %v505
        %v509 = vsub.f32 %v494, %v506
        %v510 = vsub.f32 %v496, %v506
        %v511 = vmul.f32 %v507, %v507
        %v512 = vmul.f32 %v508, %v508
        %v513 = vmul.f32 %v509, %v509
        %v514 = vmul.f32 %v510, %v510
        %v515 = vadd.f32 %v511, %v512
        %516 = vadd.xlane.f32.xlu0 %v515
        %v517 = vpop.xlane.xlu0 %516
        %v518 = vadd.f32 %v513, %v514
        %519 = vadd.xlane.f32.xlu0 %v518
        %v520 = vpop.xlane.xlu0 %519
        %v521 = vmul.f32 %v517, %v504
        %v522 = vmul.f32 %v520, %v504
        %v523 = vadd.f32 %v521, 1e-05
        %v524 = vadd.f32 %v522, 1e-05
        %v525 = vrsqrt.pop %v523
        %v526 = vrsqrt.pop %v524
        %v527 = vmul.f32 %v507, %v525
        %v528 = vmul.f32 %v508, %v525
        %v529 = vmul.f32 %v509, %v526
        %v530 = vmul.f32 %v510, %v526
        %v531 = vld [vmem:[%s2] sm:$0xff]
        %v532 = vld [vmem:[%s2 + $0x8] sm:$0xff]
        %534 = vset.pattern.permute.xlu0 0
        %535 = vperm.xlu0 %534, %v531
        %v536 = vpop.permute.xlu0 %535
        %539 = vset.pattern.permute.xlu0 0
        %540 = vperm.xlu0 %539, %v532
        %v541 = vpop.permute.xlu0 %540
        %v543 = vmul.f32 %v527, %v536
        %v544 = vmul.f32 %v528, %v536
        %v545 = vmul.f32 %v529, %v541
        %v546 = vmul.f32 %v530, %v541
        %v547 = vld [vmem:[%s3] sm:$0xff]
        %v548 = vld [vmem:[%s3 + $0x8] sm:$0xff]
        %550 = vset.pattern.permute.xlu0 0
        %551 = vperm.xlu0 %550, %v547
        %v552 = vpop.permute.xlu0 %551
        %555 = vset.pattern.permute.xlu0 0
        %556 = vperm.xlu0 %555, %v548
        %v557 = vpop.permute.xlu0 %556
        %v559 = vadd.f32 %v543, %v552
        %v560 = vadd.f32 %v544, %v552
        %v561 = vadd.f32 %v545, %v557
        %v562 = vadd.f32 %v546, %v557
        %v563 = vmax.f32 %v559, 0.0
        %v564 = vmax.f32 %v560, 0.0
        %v565 = vmax.f32 %v561, 0.0
        %v566 = vmax.f32 %v562, 0.0
        %567 = vst [vmem:[%s230] sm:$0xff] %v563
        %568 = vst [vmem:[%s230 + $0x8] sm:$0xff] %v564
        %569 = vst [vmem:[%s230 + $0x10] sm:$0xff] %v565
        %570 = vst [vmem:[%s230 + $0x18] sm:$0xff] %v566
        %s571 = sand.u32 %s119, 1
        %s572 = scalar_lea.sflag [#allocation4], %s571
        %s573 = sand.u32 %s119, 1
        %s574 = smul.addr %s573, 32
        %s575 = scalar_lea.vmem [#allocation7], %s574
        // Predicated region
        $region45: #{tpu_custom_call.1} parent=35 // pred_check
          %p576 = pneg %p129
        $region46: #{tpu_custom_call.1} parent=35 // pred_check_branch
          %578 = sbr.rel (%p576) target = $region48
        $region47: #{tpu_custom_call.1} parent=35 // pred_region
          %s580 = ssub.s32 512, 512
          %581 = vsyncadd %s572, %s580
          %s582 = smul.addr %s22, 4
          %s583 = smul.addr %s582, 128
          %s584 = scalar_lea.hbm %s4, %s583
          %s585 = sshll.u32 %s575, 4
          %s586 = int_to_ptr.vmem [resolvable:$true] %s585
          %591 = dma.vmem_to_hbm [thread:$0]  %s586, 512, %s584, %s572, 256, 256, 16
        $region48: #{tpu_custom_call.1} parent=35 // pred_fallthru
          _
      $region36: #{tpu_custom_call.1} parent=5 // pred_fallthru
        _
      %p592 = scmp.le.s32.totalorder 2, %s17
      // Predicated region
      $region49: #{tpu_custom_call.1} parent=5 // pred_check
        %p593 = pneg %p592
      $region50: #{tpu_custom_call.1} parent=5 // pred_check_branch
        %595 = sbr.rel (%p593) target = $region52
      $region51: #{tpu_custom_call.1} parent=5 // pred_region
        %s596 = ssub.s32 %s17, 2
        // Predicated region
        $region53: #{tpu_custom_call.1} parent=51 // pred_check
          %p597 = pneg %p135
        $region54: #{tpu_custom_call.1} parent=51 // pred_check_branch
          %599 = sbr.rel (%p597) target = $region56
        $region55: #{tpu_custom_call.1} parent=51 // pred_region
          %s600 = sand.u32 %s120, 1
          %s601 = scalar_lea.sflag [#allocation4], %s600
          %s602 = sand.u32 %s120, 1
          %s603 = smul.addr %s602, 32
          %s604 = scalar_lea.vmem [#allocation7], %s603
          %605 = dma.done %s601, 512
        $region56: #{tpu_custom_call.1} parent=51 // pred_fallthru
          _
      $region52: #{tpu_custom_call.1} parent=5 // pred_fallthru
        _
    $region6: #{tpu_custom_call.1} parent=1 // loop_footer
      %s21 = sadd.s32 1, %s17
    $region7: #{tpu_custom_call.1} parent=1 // loop_footer_branch
      %16 = sbr.rel target = $region3
    $region8: #{tpu_custom_call.1} parent=1 // loop_exit
      _
    %606 = vsyncpa [#allocation3], 1
    %s607 = scalar_lea.sflag [#allocation3], 1
    %608 = vsyncpa %s607, 1
    %609 = vsyncpa [#allocation6], 1
    %s610 = scalar_lea.sflag [#allocation6], 1
    %611 = vsyncpa %s610, 1
    %612 = vsyncpa [#allocation4], 1
    %s613 = scalar_lea.sflag [#allocation4], 1
    %614 = vsyncpa %s613, 1

</llo_original>
